<compile_context>
chip_gen: v7x
topology: tpu7x:2x2x1
jax: 0.10.0
libtpu: 0.0.40
codegen_flags: <defaults>
</compile_context>

<pallas_src>
import functools

import jax
import jax.numpy as jnp
from jax.experimental import pallas as pl
from jax.experimental.pallas import tpu as pltpu


def _round_up(a, b):
    return ((a + b - 1) // b) * b


def _lane_pad(d):
    return _round_up(max(int(d), 1), 128)


def _sub_pad(d):
    return _round_up(max(int(d), 1), 8)


def _vmem_capacity_bytes():
    try:
        return int(pltpu.get_tpu_info().vmem_capacity_bytes)
    except Exception:
        return 64 * 1024 * 1024  # conservative (v7x per-TensorCore)


def _choose_group(M, n_units, n_numbers, max_lanes=512):
    """Largest fold factor G dividing M with G*n_units, G*n_numbers <= max_lanes."""
    g = 1
    for cand in range(1, min(M, 128) + 1):
        if M % cand:
            continue
        if cand * n_units <= max_lanes and cand * n_numbers <= max_lanes:
            g = cand
    return g


def _block_diag_repeat(w, g):
    """(a, b) -> (g*a, g*b) block-diagonal with w repeated g times."""
    a, b = w.shape
    eye = jnp.eye(g, dtype=w.dtype)
    return (eye[:, None, :, None] * w[None, :, None, :]).reshape(g * a, g * b)


def _choose_tiling(rows_total, G, n_units, n_numbers, compute_itemsize, vmem_budget):
    """Returns (tile_rows, chunk_rows, num_tiles); chunk_rows always divides tile_rows."""
    lanes_x = _lane_pad(G)
    lanes_h = _lane_pad(G * n_units)
    lanes_o = _lane_pad(G * n_numbers)

    # VMEM-resident weights / biases (double-buffered by the pipeline).
    weight_bytes = 2 * compute_itemsize * (
        _sub_pad(G) * lanes_h + _sub_pad(G * n_units) * (lanes_h + lanes_o))
    weight_bytes += 2 * 4 * (2 * lanes_h + lanes_o)

    # Rows per in-kernel compute chunk: keep each f32 temporary at ~<=128 KiB so
    # intermediates stay (mostly) vreg-resident instead of VMEM round-trips.
    chunk = max(8, min(256, (128 * 1024) // (4 * lanes_h)))
    chunk = (chunk // 8) * 8

    if rows_total <= chunk:
        return rows_total, rows_total, 1   # single full block (legal: == array dim)

    per_row = 2 * 4 * (lanes_x + lanes_o)           # double-buffered x / out blocks
    scratch = 4 * 4 * chunk * lanes_h               # ~4 live f32 temps per chunk
    tile = chunk
    while tile * 2 <= 4096 and weight_bytes + scratch + (tile * 2) * per_row <= vmem_budget:
        tile *= 2
    # Don't exceed the problem (keep tile a multiple of chunk).
    tile = min(tile, max(chunk, (rows_total // chunk) * chunk))
    # Allow >=2 grid steps so a 2-TensorCore chip (v7x) can split the parallel axis.
    if rows_total >= 2 * chunk:
        tile = min(tile, _round_up(pl.cdiv(rows_total, 2), chunk))
    return tile, chunk, pl.cdiv(rows_total, tile)


def _sorting_mlp_kernel(x_ref, w1_ref, b1_ref, w2_ref, b2_ref, w3_ref, b3_ref,
                        o_ref, *, chunk_rows, n_chunks, compute_dtype):
    def mlp(xs):
        xs = xs.astype(compute_dtype)
        h = jnp.dot(xs, w1_ref[...], preferred_element_type=jnp.float32) + b1_ref[...]
        h = jnp.maximum(h, 0.0).astype(compute_dtype)
        h = jnp.dot(h, w2_ref[...], preferred_element_type=jnp.float32) + b2_ref[...]
        h = jnp.maximum(h, 0.0).astype(compute_dtype)
        y = jnp.dot(h, w3_ref[...], preferred_element_type=jnp.float32) + b3_ref[...]
        return y.astype(o_ref.dtype)

    if n_chunks == 1:
        o_ref[...] = mlp(x_ref[...])
    else:
        def body(c, carry):
            r0 = pl.multiple_of(c * chunk_rows, chunk_rows)
            o_ref[pl.ds(r0, chunk_rows), :] = mlp(x_ref[pl.ds(r0, chunk_rows), :])
            return carry
        jax.lax.fori_loop(0, n_chunks, body, 0, unroll=n_chunks <= 8)


def sorting_network_forward(x, params, *, compute_dtype=jnp.bfloat16):
    """x: [batch, n_numbers] f32 -> log_alpha [batch, n_numbers, n_numbers] f32.

    compute_dtype=bfloat16 (default) feeds the MXU with bf16 operands and keeps
    f32 accumulation; compute_dtype=float32 is the high-precision parity mode.
    """
    w1, b1, w2, b2, w3, b3 = params
    batch, n_numbers = x.shape
    n_units = w1.shape[1]
    M = batch * n_numbers

    G = _choose_group(M, n_units, n_numbers)
    rows_total = M // G

    vmem_cap = _vmem_capacity_bytes()
    budget = min(max(vmem_cap * 2 // 5, 16 << 20), 64 << 20)
    vmem_limit = int(min(max(2 * budget, 32 << 20), 96 << 20, vmem_cap * 3 // 4))

    itemsize = jnp.dtype(compute_dtype).itemsize
    tile_rows, chunk_rows, num_tiles = _choose_tiling(
        rows_total, G, n_units, n_numbers, itemsize, budget)
    n_chunks = tile_rows // chunk_rows

    # Fold weights once in the wrapper: block-diagonal expansion + pre-cast to
    # compute_dtype (no per-step casts inside the kernel).  Biases stay f32.
    w1b = _block_diag_repeat(w1, G).astype(compute_dtype)        # (G, G*U)
    w2b = _block_diag_repeat(w2, G).astype(compute_dtype)        # (G*U, G*U)
    w3b = _block_diag_repeat(w3, G).astype(compute_dtype)        # (G*U, G*N)
    b1b = jnp.tile(b1.astype(jnp.float32), (1, G))               # (1, G*U)
    b2b = jnp.tile(b2.astype(jnp.float32), (1, G))               # (1, G*U)
    b3b = jnp.tile(b3.astype(jnp.float32), (1, G))               # (1, G*N)

    # Contiguous reshape (metadata only): no wrapper pad, no slice afterwards.
    x2 = x.reshape(rows_total, G).astype(jnp.float32)

    kernel = functools.partial(
        _sorting_mlp_kernel, chunk_rows=chunk_rows, n_chunks=n_chunks,
        compute_dtype=compute_dtype)

    out2 = pl.pallas_call(
        kernel,
        out_shape=jax.ShapeDtypeStruct((rows_total, G * n_numbers), jnp.float32),
        grid=(num_tiles,),
        in_specs=[
            # Streamed input rows (double-buffered by the Pallas pipeline).
            pl.BlockSpec((tile_rows, G), lambda i: (i, 0)),
            # Folded weights / biases: full-array, constant index -> VMEM resident.
            pl.BlockSpec((G, G * n_units), lambda i: (0, 0)),
            pl.BlockSpec((1, G * n_units), lambda i: (0, 0)),
            pl.BlockSpec((G * n_units, G * n_units), lambda i: (0, 0)),
            pl.BlockSpec((1, G * n_units), lambda i: (0, 0)),
            pl.BlockSpec((G * n_units, G * n_numbers), lambda i: (0, 0)),
            pl.BlockSpec((1, G * n_numbers), lambda i: (0, 0)),
        ],
        out_specs=pl.BlockSpec((tile_rows, G * n_numbers), lambda i: (i, 0)),
        compiler_params=pltpu.CompilerParams(
            dimension_semantics=("parallel",),
            vmem_limit_bytes=vmem_limit,
        ),
    )(x2, w1b, b1b, w2b, b2b, w3b, b3b)

    return out2.reshape(batch, n_numbers, n_numbers)


def init_params(key, n_numbers, n_units):
    """PyTorch-style init: U(-1/sqrt(fan_in), 1/sqrt(fan_in)); weights stored (in, out)."""
    k1, k2, k3, k4, k5, k6 = jax.random.split(key, 6)

    def uni(k, shape, fan_in):
        bound = 1.0 / jnp.sqrt(jnp.float32(fan_in))
        return jax.random.uniform(k, shape, jnp.float32, -bound, bound)

    w1 = uni(k1, (1, n_units), 1)
    b1 = uni(k2, (1, n_units), 1)
    w2 = uni(k3, (n_units, n_units), n_units)
    b2 = uni(k4, (1, n_units), n_units)
    w3 = uni(k5, (n_units, n_numbers), n_units)
    b3 = uni(k6, (1, n_numbers), n_units)
    return (w1, b1, w2, b2, w3, b3)


def reference_forward(x, params):
    w1, b1, w2, b2, w3, b3 = params
    batch, n_numbers = x.shape
    hp = jax.lax.Precision.HIGHEST
    h = x.reshape(-1, 1)
    h = jnp.maximum(jnp.dot(h, w1, precision=hp) + b1, 0.0)
    h = jnp.maximum(jnp.dot(h, w2, precision=hp) + b2, 0.0)
    out = jnp.dot(h, w3, precision=hp) + b3
    return out.reshape(batch, n_numbers, n_numbers)


if __name__ == "__main__":
    batch = 2
    n_numbers = 8
    n_units = 32

    key = jax.random.PRNGKey(0)
    kx, kp = jax.random.split(key)

    x = jax.random.uniform(kx, (batch, n_numbers), jnp.float32)
    params = init_params(kp, n_numbers, n_units)

    ref = reference_forward(x, params)

    # Default bf16 MXU operands (f32 accumulation).
    log_alpha = jax.block_until_ready(sorting_network_forward(x, params))
    assert log_alpha.shape == (batch, n_numbers, n_numbers)
    assert jnp.allclose(log_alpha, ref, atol=5e-2, rtol=5e-2)

    # Opt-in f32 parity mode.
    log_alpha_f32 = jax.block_until_ready(
        sorting_network_forward(x, params, compute_dtype=jnp.float32))
    assert jnp.allclose(log_alpha_f32, ref, atol=1e-4, rtol=1e-4)

    print("KERNEL_OK")
</pallas_src>

<mosaic_0001>
module attributes {stable_mosaic.version = 11 : i64} {
  func.func @_sorting_mlp_kernel(%arg0: i32, %arg1: memref<1x16xf32, #tpu.memory_space<vmem>>, %arg2: memref<16x512xbf16, #tpu.memory_space<vmem>>, %arg3: memref<1x512xf32, #tpu.memory_space<vmem>>, %arg4: memref<512x512xbf16, #tpu.memory_space<vmem>>, %arg5: memref<1x512xf32, #tpu.memory_space<vmem>>, %arg6: memref<512x128xbf16, #tpu.memory_space<vmem>>, %arg7: memref<1x128xf32, #tpu.memory_space<vmem>>, %arg8: memref<1x128xf32, #tpu.memory_space<vmem>>) attributes {dimension_semantics = [#tpu.dimension_semantics<parallel>], iteration_bounds = array<i64: 1>, scalar_prefetch = 0 : i64, scratch_operands = 0 : i64, tpu.core_type = #tpu.core_type<tc>, window_params = [{transform_indices = @transform_0, window_bounds = array<i64: 1, 16>}, {pipeline_mode = #tpu.pipeline_mode<synchronous>, transform_indices = @transform_1, window_bounds = array<i64: 16, 512>}, {pipeline_mode = #tpu.pipeline_mode<synchronous>, transform_indices = @transform_2, window_bounds = array<i64: 1, 512>}, {pipeline_mode = #tpu.pipeline_mode<synchronous>, transform_indices = @transform_3, window_bounds = array<i64: 512, 512>}, {pipeline_mode = #tpu.pipeline_mode<synchronous>, transform_indices = @transform_4, window_bounds = array<i64: 1, 512>}, {pipeline_mode = #tpu.pipeline_mode<synchronous>, transform_indices = @transform_5, window_bounds = array<i64: 512, 128>}, {pipeline_mode = #tpu.pipeline_mode<synchronous>, transform_indices = @transform_6, window_bounds = array<i64: 1, 128>}, {transform_indices = @transform_7, window_bounds = array<i64: 1, 128>}]} {
    %c0 = arith.constant 0 : index
    %c0_0 = arith.constant 0 : index
    %0 = vector.load %arg1[%c0, %c0_0] : memref<1x16xf32, #tpu.memory_space<vmem>>, vector<1x16xf32>
    %1 = arith.truncf %0 : vector<1x16xf32> to vector<1x16xbf16>
    %c0_1 = arith.constant 0 : index
    %c0_2 = arith.constant 0 : index
    %2 = vector.load %arg2[%c0_1, %c0_2] : memref<16x512xbf16, #tpu.memory_space<vmem>>, vector<16x512xbf16>
    %cst = arith.constant dense<0.000000e+00> : vector<1x512xf32>
    %3 = tpu.matmul %1, %2, %cst {dimension_numbers = #tpu.dot_dimension_numbers<[1], [0], [0], [1], [0, 0, 1, 1], [], []>} : vector<1x16xbf16>, vector<16x512xbf16>, vector<1x512xf32> -> vector<1x512xf32>
    %c0_3 = arith.constant 0 : index
    %c0_4 = arith.constant 0 : index
    %4 = vector.load %arg3[%c0_3, %c0_4] : memref<1x512xf32, #tpu.memory_space<vmem>>, vector<1x512xf32>
    %5 = arith.addf %3, %4 : vector<1x512xf32>
    %cst_5 = arith.constant 0.000000e+00 : f32
    %6 = vector.broadcast %cst_5 : f32 to vector<1x512xf32>
    %7 = arith.maximumf %5, %6 : vector<1x512xf32>
    %8 = arith.truncf %7 : vector<1x512xf32> to vector<1x512xbf16>
    %c0_6 = arith.constant 0 : index
    %c0_7 = arith.constant 0 : index
    %9 = vector.load %arg4[%c0_6, %c0_7] : memref<512x512xbf16, #tpu.memory_space<vmem>>, vector<512x512xbf16>
    %cst_8 = arith.constant dense<0.000000e+00> : vector<1x512xf32>
    %10 = tpu.matmul %8, %9, %cst_8 {dimension_numbers = #tpu.dot_dimension_numbers<[1], [0], [0], [1], [0, 0, 1, 1], [], []>} : vector<1x512xbf16>, vector<512x512xbf16>, vector<1x512xf32> -> vector<1x512xf32>
    %c0_9 = arith.constant 0 : index
    %c0_10 = arith.constant 0 : index
    %11 = vector.load %arg5[%c0_9, %c0_10] : memref<1x512xf32, #tpu.memory_space<vmem>>, vector<1x512xf32>
    %12 = arith.addf %10, %11 : vector<1x512xf32>
    %cst_11 = arith.constant 0.000000e+00 : f32
    %13 = vector.broadcast %cst_11 : f32 to vector<1x512xf32>
    %14 = arith.maximumf %12, %13 : vector<1x512xf32>
    %15 = arith.truncf %14 : vector<1x512xf32> to vector<1x512xbf16>
    %c0_12 = arith.constant 0 : index
    %c0_13 = arith.constant 0 : index
    %16 = vector.load %arg6[%c0_12, %c0_13] : memref<512x128xbf16, #tpu.memory_space<vmem>>, vector<512x128xbf16>
    %cst_14 = arith.constant dense<0.000000e+00> : vector<1x128xf32>
    %17 = tpu.matmul %15, %16, %cst_14 {dimension_numbers = #tpu.dot_dimension_numbers<[1], [0], [0], [1], [0, 0, 1, 1], [], []>} : vector<1x512xbf16>, vector<512x128xbf16>, vector<1x128xf32> -> vector<1x128xf32>
    %c0_15 = arith.constant 0 : index
    %c0_16 = arith.constant 0 : index
    %18 = vector.load %arg7[%c0_15, %c0_16] : memref<1x128xf32, #tpu.memory_space<vmem>>, vector<1x128xf32>
    %19 = arith.addf %17, %18 : vector<1x128xf32>
    %c0_17 = arith.constant 0 : index
    %c0_18 = arith.constant 0 : index
    %20 = vector.load %arg8[%c0_17, %c0_18] : memref<1x128xf32, #tpu.memory_space<vmem>>, vector<1x128xf32>
    tpu.vector_store %arg8[%c0_17, %c0_18], %19 {strides = array<i32>} : memref<1x128xf32, #tpu.memory_space<vmem>>, vector<1x128xf32>,
    return
  }
  func.func @transform_0(%arg0: i32) -> (i32, i32) {
    %c0_i32 = arith.constant 0 : i32
    %c0_i32_0 = arith.constant 0 : i32
    return %arg0, %c0_i32 : i32, i32
  }
  func.func @transform_1(%arg0: i32) -> (i32, i32) {
    %c0_i32 = arith.constant 0 : i32
    %c0_i32_0 = arith.constant 0 : i32
    %c0_i32_1 = arith.constant 0 : i32
    return %c0_i32, %c0_i32_0 : i32, i32
  }
  func.func @transform_2(%arg0: i32) -> (i32, i32) {
    %c0_i32 = arith.constant 0 : i32
    %c0_i32_0 = arith.constant 0 : i32
    %c0_i32_1 = arith.constant 0 : i32
    return %c0_i32, %c0_i32_0 : i32, i32
  }
  func.func @transform_3(%arg0: i32) -> (i32, i32) {
    %c0_i32 = arith.constant 0 : i32
    %c0_i32_0 = arith.constant 0 : i32
    %c0_i32_1 = arith.constant 0 : i32
    return %c0_i32, %c0_i32_0 : i32, i32
  }
  func.func @transform_4(%arg0: i32) -> (i32, i32) {
    %c0_i32 = arith.constant 0 : i32
    %c0_i32_0 = arith.constant 0 : i32
    %c0_i32_1 = arith.constant 0 : i32
    return %c0_i32, %c0_i32_0 : i32, i32
  }
  func.func @transform_5(%arg0: i32) -> (i32, i32) {
    %c0_i32 = arith.constant 0 : i32
    %c0_i32_0 = arith.constant 0 : i32
    %c0_i32_1 = arith.constant 0 : i32
    return %c0_i32, %c0_i32_0 : i32, i32
  }
  func.func @transform_6(%arg0: i32) -> (i32, i32) {
    %c0_i32 = arith.constant 0 : i32
    %c0_i32_0 = arith.constant 0 : i32
    %c0_i32_1 = arith.constant 0 : i32
    return %c0_i32, %c0_i32_0 : i32, i32
  }
  func.func @transform_7(%arg0: i32) -> (i32, i32) {
    %c0_i32 = arith.constant 0 : i32
    %c0_i32_0 = arith.constant 0 : i32
    return %arg0, %c0_i32 : i32, i32
  }
}

</mosaic_0001>

<llo_original>
// kernel: tpu_custom_call.1
$region0: #{tpu_custom_call.1}
  #allocation0 [shape = 'u32[]', space=smem, size = 0x4, offset = 0x4, fixed_abs, tag = 'smem constant byte address 0x4 - core index']
  #allocation1 [shape = 'u32[144,128]{1,0:T(1,128)}', space=vmem, size = 0x12000, scoped, tag = 'internal scratch']
  %s0 = inlined_call_operand.hbm [shape: f32[1,16], index: 0, kind: input, shape index: {}]
  %s1 = inlined_call_operand.hbm [shape: bf16[16,512], index: 1, kind: input, shape index: {}]
  %s2 = inlined_call_operand.vmem [shape: f32[1,512], index: 2, kind: input, shape index: {}]
  %s3 = inlined_call_operand.hbm [shape: bf16[512,512], index: 3, kind: input, shape index: {}]
  %s4 = inlined_call_operand.vmem [shape: f32[1,512], index: 4, kind: input, shape index: {}]
  %s5 = inlined_call_operand.hbm [shape: bf16[512,128], index: 5, kind: input, shape index: {}]
  %s6 = inlined_call_operand.vmem [shape: f32[1,128], index: 6, kind: input, shape index: {}]
  %s7 = inlined_call_operand.hbm [shape: f32[1,128], index: 7, kind: output, shape index: {}]
  %s8 = sld [smem:[#allocation0]]
  $region54: #{tpu_custom_call.1} parent=0
    _
  %s10 = ssub.s32 1, %s8
  %s11 = scalar_select 0, %s10, %s8
  $region1: #{tpu_custom_call.1} parent=0
    #allocation2 [shape = 'u8[512]{0}', space=vmem, size = 0x400, scoped, tag = 'input window, operand 0, single buffered']
    #allocation3 [shape = 's32[1]{0}', space=sflag, size = 0x4, scoped, tag = 'scoped memory for tpu_custom_call.1']
    #allocation4 [shape = 's32[1]{0}', space=sflag, size = 0x4, scoped, tag = 'scoped memory for tpu_custom_call.1']
    #allocation5 [shape = 'u8[16384]{0}', space=vmem, size = 0x4000, scoped, tag = 'input window, operand 1, single buffered']
    #allocation6 [shape = 's32[1]{0}', space=sflag, size = 0x4, scoped, tag = 'scoped memory for tpu_custom_call.1']
    #allocation7 [shape = 'u8[524288]{0}', space=vmem, size = 0x80000, scoped, tag = 'input window, operand 3, single buffered']
    #allocation8 [shape = 'u8[131072]{0}', space=vmem, size = 0x20000, scoped, tag = 'input window, operand 5, single buffered']
    #allocation9 [shape = 's32[1]{0}', space=sflag, size = 0x4, scoped, tag = 'scoped memory for tpu_custom_call.1']
    #allocation10 [shape = 'u8[512]{0}', space=vmem, size = 0x400, scoped, tag = 'output window, operand 0, single buffered']
    %12 = vsyncpa [#allocation3], 0
    %13 = vsyncpa [#allocation6], 0
    %14 = vsyncpa [#allocation9], 0
    %15 = vsyncpa [#allocation4], 0
    // Predicated region
    $region2: #{tpu_custom_call.1} parent=1 // pred_check
      _
    $region3: #{tpu_custom_call.1} parent=1 // pred_check_branch
      %17 = sbr.rel (0) target = $region5
    $region4: #{tpu_custom_call.1} parent=1 // pred_region
      %s19 = ssub.s32 16, 16
      %20 = vsyncadd [#allocation3], %s19
      %s22 = sshll.u32 [#allocation2], 4
      %s23 = int_to_ptr.vmem [resolvable:$true] %s22
      %25 = dma.hbm_to_vmem [thread:$0]  %s0, 16, %s23, [#allocation3]
    $region5: #{tpu_custom_call.1} parent=1 // pred_fallthru
      _
    // Predicated region
    $region6: #{tpu_custom_call.1} parent=1 // pred_check
      _
    $region7: #{tpu_custom_call.1} parent=1 // pred_check_branch
      %27 = sbr.rel (0) target = $region9
    $region8: #{tpu_custom_call.1} parent=1 // pred_region
      %s29 = ssub.s32 512, 512
      %30 = vsyncadd [#allocation6], %s29
      %s31 = sshll.u32 [#allocation5], 4
      %s32 = int_to_ptr.vmem [resolvable:$true] %s31
      %37 = dma.hbm_to_vmem [thread:$0]  %s1, 512, %s32, [#allocation6], 256, 256, 16
    $region9: #{tpu_custom_call.1} parent=1 // pred_fallthru
      _
    // Predicated region
    $region10: #{tpu_custom_call.1} parent=1 // pred_check
      _
    $region11: #{tpu_custom_call.1} parent=1 // pred_check_branch
      %39 = sbr.rel (0) target = $region13
    $region12: #{tpu_custom_call.1} parent=1 // pred_region
      _
    $region13: #{tpu_custom_call.1} parent=1 // pred_fallthru
      _
    // Predicated region
    $region14: #{tpu_custom_call.1} parent=1 // pred_check
      _
    $region15: #{tpu_custom_call.1} parent=1 // pred_check_branch
      %41 = sbr.rel (0) target = $region17
    $region16: #{tpu_custom_call.1} parent=1 // pred_region
      %s43 = ssub.s32 16384, 16384
      %44 = vsyncadd [#allocation6], %s43
      %s45 = sshll.u32 [#allocation7], 4
      %s46 = int_to_ptr.vmem [resolvable:$true] %s45
      %51 = dma.hbm_to_vmem [thread:$0]  %s3, 16384, %s46, [#allocation6], 256, 256, 16
    $region17: #{tpu_custom_call.1} parent=1 // pred_fallthru
      _
    // Predicated region
    $region18: #{tpu_custom_call.1} parent=1 // pred_check
      _
    $region19: #{tpu_custom_call.1} parent=1 // pred_check_branch
      %53 = sbr.rel (0) target = $region21
    $region20: #{tpu_custom_call.1} parent=1 // pred_region
      _
    $region21: #{tpu_custom_call.1} parent=1 // pred_fallthru
      _
    // Predicated region
    $region22: #{tpu_custom_call.1} parent=1 // pred_check
      _
    $region23: #{tpu_custom_call.1} parent=1 // pred_check_branch
      %55 = sbr.rel (0) target = $region25
    $region24: #{tpu_custom_call.1} parent=1 // pred_region
      %s57 = ssub.s32 4096, 4096
      %58 = vsyncadd [#allocation9], %s57
      %s59 = sshll.u32 [#allocation8], 4
      %s60 = int_to_ptr.vmem [resolvable:$true] %s59
      %65 = dma.hbm_to_vmem [thread:$0]  %s5, 4096, %s60, [#allocation9], 64, 64, 4
    $region25: #{tpu_custom_call.1} parent=1 // pred_fallthru
      _
    // Predicated region
    $region26: #{tpu_custom_call.1} parent=1 // pred_check
      _
    $region27: #{tpu_custom_call.1} parent=1 // pred_check_branch
      %67 = sbr.rel (0) target = $region29
    $region28: #{tpu_custom_call.1} parent=1 // pred_region
      _
    $region29: #{tpu_custom_call.1} parent=1 // pred_fallthru
      _
    // Predicated region
    $region30: #{tpu_custom_call.1} parent=1 // pred_check
      _
    $region31: #{tpu_custom_call.1} parent=1 // pred_check_branch
      %69 = sbr.rel (0) target = $region33
    $region32: #{tpu_custom_call.1} parent=1 // pred_region
      %70 = dma.done [#allocation3], 16
    $region33: #{tpu_custom_call.1} parent=1 // pred_fallthru
      _
    // Predicated region
    $region34: #{tpu_custom_call.1} parent=1 // pred_check
      _
    $region35: #{tpu_custom_call.1} parent=1 // pred_check_branch
      %72 = sbr.rel (0) target = $region37
    $region36: #{tpu_custom_call.1} parent=1 // pred_region
      %73 = dma.done [#allocation6], 512
    $region37: #{tpu_custom_call.1} parent=1 // pred_fallthru
      _
    // Predicated region
    $region38: #{tpu_custom_call.1} parent=1 // pred_check
      _
    $region39: #{tpu_custom_call.1} parent=1 // pred_check_branch
      %75 = sbr.rel (0) target = $region41
    $region40: #{tpu_custom_call.1} parent=1 // pred_region
      %76 = dma.done [#allocation6], 16384
    $region41: #{tpu_custom_call.1} parent=1 // pred_fallthru
      _
    // Predicated region
    $region42: #{tpu_custom_call.1} parent=1 // pred_check
      _
    $region43: #{tpu_custom_call.1} parent=1 // pred_check_branch
      %78 = sbr.rel (0) target = $region45
    $region44: #{tpu_custom_call.1} parent=1 // pred_region
      %79 = dma.done [#allocation9], 4096
    $region45: #{tpu_custom_call.1} parent=1 // pred_fallthru
      _
    %v81 = vld [vmem:[#allocation2] sm:$0x1]
    %v82 = vpack.c.bf16 %v81, %v81
    %v83 = vld [vmem:[#allocation5] sm:$0xff]
    %v84 = vld [vmem:[#allocation5 + $0x8] sm:$0xff]
    %v85 = vld [vmem:[#allocation5 + $0x10] sm:$0xff]
    %v86 = vld [vmem:[#allocation5 + $0x18] sm:$0xff]
    %v87 = vld [vmem:[%s2] sm:$0xf]
    %v92 = vunpack.c.l.b16 %v83
    %v93 = vunpack.c.h.b16 %v83
    %v94 = vunpack.c.l.b16 %v84
    %v95 = vunpack.c.h.b16 %v84
    %v96 = vunpack.c.l.b16 %v85
    %v97 = vunpack.c.h.b16 %v85
    %v98 = vunpack.c.l.b16 %v86
    %v99 = vunpack.c.h.b16 %v86
    %v100 = vpack.c.b16 %v96, %v92
    %v101 = vpack.c.b16 %v97, %v93
    %v102 = vpack.c.b16 %v98, %v94
    %v103 = vpack.c.b16 %v99, %v95
    %v109 = vlaneseq
    %v110 = vshrl.u32 %v109, 7
    %v111 = vsub.s32 0, %v110
    %v112 = vrot.slane %v87, %v111
    %v113 = vlaneseq
    %v114 = vshrl.u32 %v113, 7
    %v115 = vsub.s32 1, %v114
    %v116 = vrot.slane %v87, %v115
    %v117 = vlaneseq
    %v118 = vshrl.u32 %v117, 7
    %v119 = vsub.s32 2, %v118
    %v120 = vrot.slane %v87, %v119
    %v121 = vlaneseq
    %v122 = vshrl.u32 %v121, 7
    %v123 = vsub.s32 3, %v122
    %v124 = vrot.slane %v87, %v123
    %vm129 = vcmask 130048
    %v131 = vsel %vm129, %v82, 0
    %133 = vmatprep.subr.bf16.mxu0 %v101
    %134 = vmatpush1.bf16.msra.mxu0 %v100
    %135 = vmatprep.subr.bf16.mxu0 0
    %136 = vmatpush1.bf16.msra.mxu0 0
    %137 = vmatprep.subr.bf16.mxu0 0
    %138 = vmatpush1.bf16.msra.mxu0 0
    %139 = vmatprep.subr.bf16.mxu0 0
    %140 = vmatpush1.bf16.msra.mxu0 0
    %141 = vmatprep.subr.bf16.mxu0 0
    %142 = vmatpush1.bf16.msra.mxu0 0
    %143 = vmatprep.subr.bf16.mxu0 0
    %144 = vmatpush1.bf16.msra.mxu0 0
    %145 = vmatprep.subr.bf16.mxu0 0
    %146 = vmatpush1.bf16.msra.mxu0 0
    %147 = vmatprep.subr.bf16.mxu0 0
    %148 = vmatpush1.bf16.msra.mxu0 0
    %149 = vmatprep.subr.bf16.mxu0 0
    %150 = vmatpush1.bf16.msra.mxu0 0
    %151 = vmatprep.subr.bf16.mxu0 0
    %152 = vmatpush1.bf16.msra.mxu0 0
    %153 = vmatprep.subr.bf16.mxu0 0
    %154 = vmatpush1.bf16.msra.mxu0 0
    %155 = vmatprep.subr.bf16.mxu0 0
    %156 = vmatpush1.bf16.msra.mxu0 0
    %157 = vmatprep.subr.bf16.mxu0 0
    %158 = vmatpush1.bf16.msra.mxu0 0
    %159 = vmatprep.subr.bf16.mxu0 0
    %160 = vmatpush1.bf16.msra.mxu0 0
    %161 = vmatprep.subr.bf16.mxu0 0
    %162 = vmatpush1.bf16.msra.mxu0 0
    %163 = vmatprep.subr.bf16.mxu0 0
    %164 = vmatpush1.bf16.msra.mxu0 0
    %165 = vmatprep.mubr.bf16.mxu0 0
    %166 = vmatmul.mubr.bf16.gmra.mrb[0].mxu0 %v131
    %v167 = vpop.f32.mrb[0].mxu0
    %v168 = vadd.f32 %v112, %v167
    %v169 = vpop.f32.mrb[0].mxu0
    %v170 = vadd.f32 %v116, %v169
    %v171 = vpop.f32.mrb[0].mxu0
    %v172 = vpop.f32.mrb[0].mxu0
    %173 = vdwg.mxu0
    %174 = vmatprep.subr.bf16.mxu0 %v103
    %175 = vmatpush1.bf16.msra.mxu0 %v102
    %176 = vmatprep.subr.bf16.mxu0 0
    %177 = vmatpush1.bf16.msra.mxu0 0
    %178 = vmatprep.subr.bf16.mxu0 0
    %179 = vmatpush1.bf16.msra.mxu0 0
    %180 = vmatprep.subr.bf16.mxu0 0
    %181 = vmatpush1.bf16.msra.mxu0 0
    %182 = vmatprep.subr.bf16.mxu0 0
    %183 = vmatpush1.bf16.msra.mxu0 0
    %184 = vmatprep.subr.bf16.mxu0 0
    %185 = vmatpush1.bf16.msra.mxu0 0
    %186 = vmatprep.subr.bf16.mxu0 0
    %187 = vmatpush1.bf16.msra.mxu0 0
    %188 = vmatprep.subr.bf16.mxu0 0
    %189 = vmatpush1.bf16.msra.mxu0 0
    %190 = vmatprep.subr.bf16.mxu0 0
    %191 = vmatpush1.bf16.msra.mxu0 0
    %192 = vmatprep.subr.bf16.mxu0 0
    %193 = vmatpush1.bf16.msra.mxu0 0
    %194 = vmatprep.subr.bf16.mxu0 0
    %195 = vmatpush1.bf16.msra.mxu0 0
    %196 = vmatprep.subr.bf16.mxu0 0
    %197 = vmatpush1.bf16.msra.mxu0 0
    %198 = vmatprep.subr.bf16.mxu0 0
    %199 = vmatpush1.bf16.msra.mxu0 0
    %200 = vmatprep.subr.bf16.mxu0 0
    %201 = vmatpush1.bf16.msra.mxu0 0
    %202 = vmatprep.subr.bf16.mxu0 0
    %203 = vmatpush1.bf16.msra.mxu0 0
    %204 = vmatprep.subr.bf16.mxu0 0
    %205 = vmatpush1.bf16.msra.mxu0 0
    %206 = vmatprep.mubr.bf16.mxu0 0
    %207 = vmatmul.mubr.bf16.gmra.mrb[0].mxu0 %v131
    %v208 = vpop.f32.mrb[0].mxu0
    %v209 = vadd.f32 %v120, %v208
    %v210 = vpop.f32.mrb[0].mxu0
    %v211 = vadd.f32 %v124, %v210
    %v212 = vpop.f32.mrb[0].mxu0
    %v213 = vpop.f32.mrb[0].mxu0
    %214 = vdwg.mxu0
    %v215 = vmax.f32 %v168, 0.0
    %v216 = vmax.f32 %v170, 0.0
    %v217 = vmax.f32 %v209, 0.0
    %v218 = vmax.f32 %v211, 0.0
    %v219 = vpack.c.bf16 %v215, %v215
    %v220 = vpack.c.bf16 %v216, %v216
    %v221 = vpack.c.bf16 %v217, %v217
    %v222 = vpack.c.bf16 %v218, %v218
    %v223 = vld [vmem:[#allocation7] sm:$0xff]
    %v224 = vld [vmem:[#allocation7 + $0x8] sm:$0xff]
    %v225 = vld [vmem:[#allocation7 + $0x10] sm:$0xff]
    %v226 = vld [vmem:[#allocation7 + $0x18] sm:$0xff]
    %v227 = vld [vmem:[#allocation7 + $0x20] sm:$0xff]
    %v228 = vld [vmem:[#allocation7 + $0x28] sm:$0xff]
    %v229 = vld [vmem:[#allocation7 + $0x30] sm:$0xff]
    %v230 = vld [vmem:[#allocation7 + $0x38] sm:$0xff]
    %v231 = vld [vmem:[#allocation7 + $0x40] sm:$0xff]
    %v232 = vld [vmem:[#allocation7 + $0x48] sm:$0xff]
    %v233 = vld [vmem:[#allocation7 + $0x50] sm:$0xff]
    %v234 = vld [vmem:[#allocation7 + $0x58] sm:$0xff]
    %v235 = vld [vmem:[#allocation7 + $0x60] sm:$0xff]
    %v236 = vld [vmem:[#allocation7 + $0x68] sm:$0xff]
    %v237 = vld [vmem:[#allocation7 + $0x70] sm:$0xff]
    %v238 = vld [vmem:[#allocation7 + $0x78] sm:$0xff]
    %v239 = vld [vmem:[#allocation7 + $0x80] sm:$0xff]
    %v240 = vld [vmem:[#allocation7 + $0x88] sm:$0xff]
    %v241 = vld [vmem:[#allocation7 + $0x90] sm:$0xff]
    %v242 = vld [vmem:[#allocation7 + $0x98] sm:$0xff]
    %v243 = vld [vmem:[#allocation7 + $0xa0] sm:$0xff]
    %v244 = vld [vmem:[#allocation7 + $0xa8] sm:$0xff]
    %v245 = vld [vmem:[#allocation7 + $0xb0] sm:$0xff]
    %v246 = vld [vmem:[#allocation7 + $0xb8] sm:$0xff]
    %v247 = vld [vmem:[#allocation7 + $0xc0] sm:$0xff]
    %v248 = vld [vmem:[#allocation7 + $0xc8] sm:$0xff]
    %v249 = vld [vmem:[#allocation7 + $0xd0] sm:$0xff]
    %v250 = vld [vmem:[#allocation7 + $0xd8] sm:$0xff]
    %v251 = vld [vmem:[#allocation7 + $0xe0] sm:$0xff]
    %v252 = vld [vmem:[#allocation7 + $0xe8] sm:$0xff]
    %v253 = vld [vmem:[#allocation7 + $0xf0] sm:$0xff]
    %v254 = vld [vmem:[#allocation7 + $0xf8] sm:$0xff]
    %v255 = vld [vmem:[#allocation7 + $0x100] sm:$0xff]
    %v256 = vld [vmem:[#allocation7 + $0x108] sm:$0xff]
    %v257 = vld [vmem:[#allocation7 + $0x110] sm:$0xff]
    %v258 = vld [vmem:[#allocation7 + $0x118] sm:$0xff]
    %v259 = vld [vmem:[#allocation7 + $0x120] sm:$0xff]
    %v260 = vld [vmem:[#allocation7 + $0x128] sm:$0xff]
    %v261 = vld [vmem:[#allocation7 + $0x130] sm:$0xff]
    %v262 = vld [vmem:[#allocation7 + $0x138] sm:$0xff]
    %v263 = vld [vmem:[#allocation7 + $0x140] sm:$0xff]
    %v264 = vld [vmem:[#allocation7 + $0x148] sm:$0xff]
    %v265 = vld [vmem:[#allocation7 + $0x150] sm:$0xff]
    %v266 = vld [vmem:[#allocation7 + $0x158] sm:$0xff]
    %v267 = vld [vmem:[#allocation7 + $0x160] sm:$0xff]
    %v268 = vld [vmem:[#allocation7 + $0x168] sm:$0xff]
    %v269 = vld [vmem:[#allocation7 + $0x170] sm:$0xff]
    %v270 = vld [vmem:[#allocation7 + $0x178] sm:$0xff]
    %v271 = vld [vmem:[#allocation7 + $0x180] sm:$0xff]
    %v272 = vld [vmem:[#allocation7 + $0x188] sm:$0xff]
    %v273 = vld [vmem:[#allocation7 + $0x190] sm:$0xff]
    %v274 = vld [vmem:[#allocation7 + $0x198] sm:$0xff]
    %v275 = vld [vmem:[#allocation7 + $0x1a0] sm:$0xff]
    %v276 = vld [vmem:[#allocation7 + $0x1a8] sm:$0xff]
    %v277 = vld [vmem:[#allocation7 + $0x1b0] sm:$0xff]
    %v278 = vld [vmem:[#allocation7 + $0x1b8] sm:$0xff]
    %v279 = vld [vmem:[#allocation7 + $0x1c0] sm:$0xff]
    %v280 = vld [vmem:[#allocation7 + $0x1c8] sm:$0xff]
    %v281 = vld [vmem:[#allocation7 + $0x1d0] sm:$0xff]
    %v282 = vld [vmem:[#allocation7 + $0x1d8] sm:$0xff]
    %v283 = vld [vmem:[#allocation7 + $0x1e0] sm:$0xff]
    %v284 = vld [vmem:[#allocation7 + $0x1e8] sm:$0xff]
    %v285 = vld [vmem:[#allocation7 + $0x1f0] sm:$0xff]
    %v286 = vld [vmem:[#allocation7 + $0x1f8] sm:$0xff]
    %v287 = vld [vmem:[#allocation7 + $0x200] sm:$0xff]
    %v288 = vld [vmem:[#allocation7 + $0x208] sm:$0xff]
    %v289 = vld [vmem:[#allocation7 + $0x210] sm:$0xff]
    %v290 = vld [vmem:[#allocation7 + $0x218] sm:$0xff]
    %v291 = vld [vmem:[#allocation7 + $0x220] sm:$0xff]
    %v292 = vld [vmem:[#allocation7 + $0x228] sm:$0xff]
    %v293 = vld [vmem:[#allocation7 + $0x230] sm:$0xff]
    %v294 = vld [vmem:[#allocation7 + $0x238] sm:$0xff]
    %v295 = vld [vmem:[#allocation7 + $0x240] sm:$0xff]
    %v296 = vld [vmem:[#allocation7 + $0x248] sm:$0xff]
    %v297 = vld [vmem:[#allocation7 + $0x250] sm:$0xff]
    %v298 = vld [vmem:[#allocation7 + $0x258] sm:$0xff]
    %v299 = vld [vmem:[#allocation7 + $0x260] sm:$0xff]
    %v300 = vld [vmem:[#allocation7 + $0x268] sm:$0xff]
    %v301 = vld [vmem:[#allocation7 + $0x270] sm:$0xff]
    %v302 = vld [vmem:[#allocation7 + $0x278] sm:$0xff]
    %v303 = vld [vmem:[#allocation7 + $0x280] sm:$0xff]
    %v304 = vld [vmem:[#allocation7 + $0x288] sm:$0xff]
    %v305 = vld [vmem:[#allocation7 + $0x290] sm:$0xff]
    %v306 = vld [vmem:[#allocation7 + $0x298] sm:$0xff]
    %v307 = vld [vmem:[#allocation7 + $0x2a0] sm:$0xff]
    %v308 = vld [vmem:[#allocation7 + $0x2a8] sm:$0xff]
    %v309 = vld [vmem:[#allocation7 + $0x2b0] sm:$0xff]
    %v310 = vld [vmem:[#allocation7 + $0x2b8] sm:$0xff]
    %v311 = vld [vmem:[#allocation7 + $0x2c0] sm:$0xff]
    %v312 = vld [vmem:[#allocation7 + $0x2c8] sm:$0xff]
    %v313 = vld [vmem:[#allocation7 + $0x2d0] sm:$0xff]
    %v314 = vld [vmem:[#allocation7 + $0x2d8] sm:$0xff]
    %v315 = vld [vmem:[#allocation7 + $0x2e0] sm:$0xff]
    %v316 = vld [vmem:[#allocation7 + $0x2e8] sm:$0xff]
    %v317 = vld [vmem:[#allocation7 + $0x2f0] sm:$0xff]
    %v318 = vld [vmem:[#allocation7 + $0x2f8] sm:$0xff]
    %v319 = vld [vmem:[#allocation7 + $0x300] sm:$0xff]
    %v320 = vld [vmem:[#allocation7 + $0x308] sm:$0xff]
    %v321 = vld [vmem:[#allocation7 + $0x310] sm:$0xff]
    %v322 = vld [vmem:[#allocation7 + $0x318] sm:$0xff]
    %v323 = vld [vmem:[#allocation7 + $0x320] sm:$0xff]
    %v324 = vld [vmem:[#allocation7 + $0x328] sm:$0xff]
    %v325 = vld [vmem:[#allocation7 + $0x330] sm:$0xff]
    %v326 = vld [vmem:[#allocation7 + $0x338] sm:$0xff]
    %v327 = vld [vmem:[#allocation7 + $0x340] sm:$0xff]
    %v328 = vld [vmem:[#allocation7 + $0x348] sm:$0xff]
    %v329 = vld [vmem:[#allocation7 + $0x350] sm:$0xff]
    %v330 = vld [vmem:[#allocation7 + $0x358] sm:$0xff]
    %v331 = vld [vmem:[#allocation7 + $0x360] sm:$0xff]
    %v332 = vld [vmem:[#allocation7 + $0x368] sm:$0xff]
    %v333 = vld [vmem:[#allocation7 + $0x370] sm:$0xff]
    %v334 = vld [vmem:[#allocation7 + $0x378] sm:$0xff]
    %v335 = vld [vmem:[#allocation7 + $0x380] sm:$0xff]
    %v336 = vld [vmem:[#allocation7 + $0x388] sm:$0xff]
    %v337 = vld [vmem:[#allocation7 + $0x390] sm:$0xff]
    %v338 = vld [vmem:[#allocation7 + $0x398] sm:$0xff]
    %v339 = vld [vmem:[#allocation7 + $0x3a0] sm:$0xff]
    %v340 = vld [vmem:[#allocation7 + $0x3a8] sm:$0xff]
    %v341 = vld [vmem:[#allocation7 + $0x3b0] sm:$0xff]
    %v342 = vld [vmem:[#allocation7 + $0x3b8] sm:$0xff]
    %v343 = vld [vmem:[#allocation7 + $0x3c0] sm:$0xff]
    %v344 = vld [vmem:[#allocation7 + $0x3c8] sm:$0xff]
    %v345 = vld [vmem:[#allocation7 + $0x3d0] sm:$0xff]
    %v346 = vld [vmem:[#allocation7 + $0x3d8] sm:$0xff]
    %v347 = vld [vmem:[#allocation7 + $0x3e0] sm:$0xff]
    %v348 = vld [vmem:[#allocation7 + $0x3e8] sm:$0xff]
    %v349 = vld [vmem:[#allocation7 + $0x3f0] sm:$0xff]
    %v350 = vld [vmem:[#allocation7 + $0x3f8] sm:$0xff]
    %v351 = vld [vmem:[%s4] sm:$0xf]
    %v480 = vunpack.c.l.b16 %v223
    %v481 = vunpack.c.h.b16 %v223
    %v482 = vunpack.c.l.b16 %v224
    %v483 = vunpack.c.h.b16 %v224
    %v484 = vunpack.c.l.b16 %v225
    %v485 = vunpack.c.h.b16 %v225
    %v486 = vunpack.c.l.b16 %v226
    %v487 = vunpack.c.h.b16 %v226
    %v488 = vunpack.c.l.b16 %v227
    %v489 = vunpack.c.h.b16 %v227
    %v490 = vunpack.c.l.b16 %v228
    %v491 = vunpack.c.h.b16 %v228
    %v492 = vunpack.c.l.b16 %v229
    %v493 = vunpack.c.h.b16 %v229
    %v494 = vunpack.c.l.b16 %v230
    %v495 = vunpack.c.h.b16 %v230
    %v496 = vunpack.c.l.b16 %v231
    %v497 = vunpack.c.h.b16 %v231
    %v498 = vunpack.c.l.b16 %v232
    %v499 = vunpack.c.h.b16 %v232
    %v500 = vunpack.c.l.b16 %v233
    %v501 = vunpack.c.h.b16 %v233
    %v502 = vunpack.c.l.b16 %v234
    %v503 = vunpack.c.h.b16 %v234
    %v504 = vunpack.c.l.b16 %v235
    %v505 = vunpack.c.h.b16 %v235
    %v506 = vunpack.c.l.b16 %v236
    %v507 = vunpack.c.h.b16 %v236
    %v508 = vunpack.c.l.b16 %v237
    %v509 = vunpack.c.h.b16 %v237
    %v510 = vunpack.c.l.b16 %v238
    %v511 = vunpack.c.h.b16 %v238
    %v512 = vunpack.c.l.b16 %v239
    %v513 = vunpack.c.h.b16 %v239
    %v514 = vunpack.c.l.b16 %v240
    %v515 = vunpack.c.h.b16 %v240
    %v516 = vunpack.c.l.b16 %v241
    %v517 = vunpack.c.h.b16 %v241
    %v518 = vunpack.c.l.b16 %v242
    %v519 = vunpack.c.h.b16 %v242
    %v520 = vunpack.c.l.b16 %v243
    %v521 = vunpack.c.h.b16 %v243
    %v522 = vunpack.c.l.b16 %v244
    %v523 = vunpack.c.h.b16 %v244
    %v524 = vunpack.c.l.b16 %v245
    %v525 = vunpack.c.h.b16 %v245
    %v526 = vunpack.c.l.b16 %v246
    %v527 = vunpack.c.h.b16 %v246
    %v528 = vunpack.c.l.b16 %v247
    %v529 = vunpack.c.h.b16 %v247
    %v530 = vunpack.c.l.b16 %v248
    %v531 = vunpack.c.h.b16 %v248
    %v532 = vunpack.c.l.b16 %v249
    %v533 = vunpack.c.h.b16 %v249
    %v534 = vunpack.c.l.b16 %v250
    %v535 = vunpack.c.h.b16 %v250
    %v536 = vunpack.c.l.b16 %v251
    %v537 = vunpack.c.h.b16 %v251
    %v538 = vunpack.c.l.b16 %v252
    %v539 = vunpack.c.h.b16 %v252
    %v540 = vunpack.c.l.b16 %v253
    %v541 = vunpack.c.h.b16 %v253
    %v542 = vunpack.c.l.b16 %v254
    %v543 = vunpack.c.h.b16 %v254
    %v544 = vunpack.c.l.b16 %v255
    %v545 = vunpack.c.h.b16 %v255
    %v546 = vunpack.c.l.b16 %v256
    %v547 = vunpack.c.h.b16 %v256
    %v548 = vunpack.c.l.b16 %v257
    %v549 = vunpack.c.h.b16 %v257
    %v550 = vunpack.c.l.b16 %v258
    %v551 = vunpack.c.h.b16 %v258
    %v552 = vunpack.c.l.b16 %v259
    %v553 = vunpack.c.h.b16 %v259
    %v554 = vunpack.c.l.b16 %v260
    %v555 = vunpack.c.h.b16 %v260
    %v556 = vunpack.c.l.b16 %v261
    %v557 = vunpack.c.h.b16 %v261
    %v558 = vunpack.c.l.b16 %v262
    %v559 = vunpack.c.h.b16 %v262
    %v560 = vunpack.c.l.b16 %v263
    %v561 = vunpack.c.h.b16 %v263
    %v562 = vunpack.c.l.b16 %v264
    %v563 = vunpack.c.h.b16 %v264
    %v564 = vunpack.c.l.b16 %v265
    %v565 = vunpack.c.h.b16 %v265
    %v566 = vunpack.c.l.b16 %v266
    %v567 = vunpack.c.h.b16 %v266
    %v568 = vunpack.c.l.b16 %v267
    %v569 = vunpack.c.h.b16 %v267
    %v570 = vunpack.c.l.b16 %v268
    %v571 = vunpack.c.h.b16 %v268
    %v572 = vunpack.c.l.b16 %v269
    %v573 = vunpack.c.h.b16 %v269
    %v574 = vunpack.c.l.b16 %v270
    %v575 = vunpack.c.h.b16 %v270
    %v576 = vunpack.c.l.b16 %v271
    %v577 = vunpack.c.h.b16 %v271
    %v578 = vunpack.c.l.b16 %v272
    %v579 = vunpack.c.h.b16 %v272
    %v580 = vunpack.c.l.b16 %v273
    %v581 = vunpack.c.h.b16 %v273
    %v582 = vunpack.c.l.b16 %v274
    %v583 = vunpack.c.h.b16 %v274
    %v584 = vunpack.c.l.b16 %v275
    %v585 = vunpack.c.h.b16 %v275
    %v586 = vunpack.c.l.b16 %v276
    %v587 = vunpack.c.h.b16 %v276
    %v588 = vunpack.c.l.b16 %v277
    %v589 = vunpack.c.h.b16 %v277
    %v590 = vunpack.c.l.b16 %v278
    %v591 = vunpack.c.h.b16 %v278
    %v592 = vunpack.c.l.b16 %v279
    %v593 = vunpack.c.h.b16 %v279
    %v594 = vunpack.c.l.b16 %v280
    %v595 = vunpack.c.h.b16 %v280
    %v596 = vunpack.c.l.b16 %v281
    %v597 = vunpack.c.h.b16 %v281
    %v598 = vunpack.c.l.b16 %v282
    %v599 = vunpack.c.h.b16 %v282
    %v600 = vunpack.c.l.b16 %v283
    %v601 = vunpack.c.h.b16 %v283
    %v602 = vunpack.c.l.b16 %v284
    %v603 = vunpack.c.h.b16 %v284
    %v604 = vunpack.c.l.b16 %v285
    %v605 = vunpack.c.h.b16 %v285
    %v606 = vunpack.c.l.b16 %v286
    %v607 = vunpack.c.h.b16 %v286
    %v608 = vunpack.c.l.b16 %v287
    %v609 = vunpack.c.h.b16 %v287
    %v610 = vunpack.c.l.b16 %v288
    %v611 = vunpack.c.h.b16 %v288
    %v612 = vunpack.c.l.b16 %v289
    %v613 = vunpack.c.h.b16 %v289
    %v614 = vunpack.c.l.b16 %v290
    %v615 = vunpack.c.h.b16 %v290
    %v616 = vunpack.c.l.b16 %v291
    %v617 = vunpack.c.h.b16 %v291
    %v618 = vunpack.c.l.b16 %v292
    %v619 = vunpack.c.h.b16 %v292
    %v620 = vunpack.c.l.b16 %v293
    %v621 = vunpack.c.h.b16 %v293
    %v622 = vunpack.c.l.b16 %v294
    %v623 = vunpack.c.h.b16 %v294
    %v624 = vunpack.c.l.b16 %v295
    %v625 = vunpack.c.h.b16 %v295
    %v626 = vunpack.c.l.b16 %v296
    %v627 = vunpack.c.h.b16 %v296
    %v628 = vunpack.c.l.b16 %v297
    %v629 = vunpack.c.h.b16 %v297
    %v630 = vunpack.c.l.b16 %v298
    %v631 = vunpack.c.h.b16 %v298
    %v632 = vunpack.c.l.b16 %v299
    %v633 = vunpack.c.h.b16 %v299
    %v634 = vunpack.c.l.b16 %v300
    %v635 = vunpack.c.h.b16 %v300
    %v636 = vunpack.c.l.b16 %v301
    %v637 = vunpack.c.h.b16 %v301
    %v638 = vunpack.c.l.b16 %v302
    %v639 = vunpack.c.h.b16 %v302
    %v640 = vunpack.c.l.b16 %v303
    %v641 = vunpack.c.h.b16 %v303
    %v642 = vunpack.c.l.b16 %v304
    %v643 = vunpack.c.h.b16 %v304
    %v644 = vunpack.c.l.b16 %v305
    %v645 = vunpack.c.h.b16 %v305
    %v646 = vunpack.c.l.b16 %v306
    %v647 = vunpack.c.h.b16 %v306
    %v648 = vunpack.c.l.b16 %v307
    %v649 = vunpack.c.h.b16 %v307
    %v650 = vunpack.c.l.b16 %v308
    %v651 = vunpack.c.h.b16 %v308
    %v652 = vunpack.c.l.b16 %v309
    %v653 = vunpack.c.h.b16 %v309
    %v654 = vunpack.c.l.b16 %v310
    %v655 = vunpack.c.h.b16 %v310
    %v656 = vunpack.c.l.b16 %v311
    %v657 = vunpack.c.h.b16 %v311
    %v658 = vunpack.c.l.b16 %v312
    %v659 = vunpack.c.h.b16 %v312
    %v660 = vunpack.c.l.b16 %v313
    %v661 = vunpack.c.h.b16 %v313
    %v662 = vunpack.c.l.b16 %v314
    %v663 = vunpack.c.h.b16 %v314
    %v664 = vunpack.c.l.b16 %v315
    %v665 = vunpack.c.h.b16 %v315
    %v666 = vunpack.c.l.b16 %v316
    %v667 = vunpack.c.h.b16 %v316
    %v668 = vunpack.c.l.b16 %v317
    %v669 = vunpack.c.h.b16 %v317
    %v670 = vunpack.c.l.b16 %v318
    %v671 = vunpack.c.h.b16 %v318
    %v672 = vunpack.c.l.b16 %v319
    %v673 = vunpack.c.h.b16 %v319
    %v674 = vunpack.c.l.b16 %v320
    %v675 = vunpack.c.h.b16 %v320
    %v676 = vunpack.c.l.b16 %v321
    %v677 = vunpack.c.h.b16 %v321
    %v678 = vunpack.c.l.b16 %v322
    %v679 = vunpack.c.h.b16 %v322
    %v680 = vunpack.c.l.b16 %v323
    %v681 = vunpack.c.h.b16 %v323
    %v682 = vunpack.c.l.b16 %v324
    %v683 = vunpack.c.h.b16 %v324
    %v684 = vunpack.c.l.b16 %v325
    %v685 = vunpack.c.h.b16 %v325
    %v686 = vunpack.c.l.b16 %v326
    %v687 = vunpack.c.h.b16 %v326
    %v688 = vunpack.c.l.b16 %v327
    %v689 = vunpack.c.h.b16 %v327
    %v690 = vunpack.c.l.b16 %v328
    %v691 = vunpack.c.h.b16 %v328
    %v692 = vunpack.c.l.b16 %v329
    %v693 = vunpack.c.h.b16 %v329
    %v694 = vunpack.c.l.b16 %v330
    %v695 = vunpack.c.h.b16 %v330
    %v696 = vunpack.c.l.b16 %v331
    %v697 = vunpack.c.h.b16 %v331
    %v698 = vunpack.c.l.b16 %v332
    %v699 = vunpack.c.h.b16 %v332
    %v700 = vunpack.c.l.b16 %v333
    %v701 = vunpack.c.h.b16 %v333
    %v702 = vunpack.c.l.b16 %v334
    %v703 = vunpack.c.h.b16 %v334
    %v704 = vunpack.c.l.b16 %v335
    %v705 = vunpack.c.h.b16 %v335
    %v706 = vunpack.c.l.b16 %v336
    %v707 = vunpack.c.h.b16 %v336
    %v708 = vunpack.c.l.b16 %v337
    %v709 = vunpack.c.h.b16 %v337
    %v710 = vunpack.c.l.b16 %v338
    %v711 = vunpack.c.h.b16 %v338
    %v712 = vunpack.c.l.b16 %v339
    %v713 = vunpack.c.h.b16 %v339
    %v714 = vunpack.c.l.b16 %v340
    %v715 = vunpack.c.h.b16 %v340
    %v716 = vunpack.c.l.b16 %v341
    %v717 = vunpack.c.h.b16 %v341
    %v718 = vunpack.c.l.b16 %v342
    %v719 = vunpack.c.h.b16 %v342
    %v720 = vunpack.c.l.b16 %v343
    %v721 = vunpack.c.h.b16 %v343
    %v722 = vunpack.c.l.b16 %v344
    %v723 = vunpack.c.h.b16 %v344
    %v724 = vunpack.c.l.b16 %v345
    %v725 = vunpack.c.h.b16 %v345
    %v726 = vunpack.c.l.b16 %v346
    %v727 = vunpack.c.h.b16 %v346
    %v728 = vunpack.c.l.b16 %v347
    %v729 = vunpack.c.h.b16 %v347
    %v730 = vunpack.c.l.b16 %v348
    %v731 = vunpack.c.h.b16 %v348
    %v732 = vunpack.c.l.b16 %v349
    %v733 = vunpack.c.h.b16 %v349
    %v734 = vunpack.c.l.b16 %v350
    %v735 = vunpack.c.h.b16 %v350
    %v736 = vpack.c.b16 %v484, %v480
    %v737 = vpack.c.b16 %v485, %v481
    %v738 = vpack.c.b16 %v486, %v482
    %v739 = vpack.c.b16 %v487, %v483
    %v740 = vpack.c.b16 %v492, %v488
    %v741 = vpack.c.b16 %v493, %v489
    %v742 = vpack.c.b16 %v494, %v490
    %v743 = vpack.c.b16 %v495, %v491
    %v744 = vpack.c.b16 %v500, %v496
    %v745 = vpack.c.b16 %v501, %v497
    %v746 = vpack.c.b16 %v502, %v498
    %v747 = vpack.c.b16 %v503, %v499
    %v748 = vpack.c.b16 %v508, %v504
    %v749 = vpack.c.b16 %v509, %v505
    %v750 = vpack.c.b16 %v510, %v506
    %v751 = vpack.c.b16 %v511, %v507
    %v752 = vpack.c.b16 %v516, %v512
    %v753 = vpack.c.b16 %v517, %v513
    %v754 = vpack.c.b16 %v518, %v514
    %v755 = vpack.c.b16 %v519, %v515
    %v756 = vpack.c.b16 %v524, %v520
    %v757 = vpack.c.b16 %v525, %v521
    %v758 = vpack.c.b16 %v526, %v522
    %v759 = vpack.c.b16 %v527, %v523
    %v760 = vpack.c.b16 %v532, %v528
    %v761 = vpack.c.b16 %v533, %v529
    %v762 = vpack.c.b16 %v534, %v530
    %v763 = vpack.c.b16 %v535, %v531
    %v764 = vpack.c.b16 %v540, %v536
    %v765 = vpack.c.b16 %v541, %v537
    %v766 = vpack.c.b16 %v542, %v538
    %v767 = vpack.c.b16 %v543, %v539
    %v768 = vpack.c.b16 %v548, %v544
    %v769 = vpack.c.b16 %v549, %v545
    %v770 = vpack.c.b16 %v550, %v546
    %v771 = vpack.c.b16 %v551, %v547
    %v772 = vpack.c.b16 %v556, %v552
    %v773 = vpack.c.b16 %v557, %v553
    %v774 = vpack.c.b16 %v558, %v554
    %v775 = vpack.c.b16 %v559, %v555
    %v776 = vpack.c.b16 %v564, %v560
    %v777 = vpack.c.b16 %v565, %v561
    %v778 = vpack.c.b16 %v566, %v562
    %v779 = vpack.c.b16 %v567, %v563
    %v780 = vpack.c.b16 %v572, %v568
    %v781 = vpack.c.b16 %v573, %v569
    %v782 = vpack.c.b16 %v574, %v570
    %v783 = vpack.c.b16 %v575, %v571
    %v784 = vpack.c.b16 %v580, %v576
    %v785 = vpack.c.b16 %v581, %v577
    %v786 = vpack.c.b16 %v582, %v578
    %v787 = vpack.c.b16 %v583, %v579
    %v788 = vpack.c.b16 %v588, %v584
    %v789 = vpack.c.b16 %v589, %v585
    %v790 = vpack.c.b16 %v590, %v586
    %v791 = vpack.c.b16 %v591, %v587
    %v792 = vpack.c.b16 %v596, %v592
    %v793 = vpack.c.b16 %v597, %v593
    %v794 = vpack.c.b16 %v598, %v594
    %v795 = vpack.c.b16 %v599, %v595
    %v796 = vpack.c.b16 %v604, %v600
    %v797 = vpack.c.b16 %v605, %v601
    %v798 = vpack.c.b16 %v606, %v602
    %v799 = vpack.c.b16 %v607, %v603
    %v800 = vpack.c.b16 %v612, %v608
    %v801 = vpack.c.b16 %v613, %v609
    %v802 = vpack.c.b16 %v614, %v610
    %v803 = vpack.c.b16 %v615, %v611
    %v804 = vpack.c.b16 %v620, %v616
    %v805 = vpack.c.b16 %v621, %v617
    %v806 = vpack.c.b16 %v622, %v618
    %v807 = vpack.c.b16 %v623, %v619
    %v808 = vpack.c.b16 %v628, %v624
    %v809 = vpack.c.b16 %v629, %v625
    %v810 = vpack.c.b16 %v630, %v626
    %v811 = vpack.c.b16 %v631, %v627
    %v812 = vpack.c.b16 %v636, %v632
    %v813 = vpack.c.b16 %v637, %v633
    %v814 = vpack.c.b16 %v638, %v634
    %v815 = vpack.c.b16 %v639, %v635
    %v816 = vpack.c.b16 %v644, %v640
    %v817 = vpack.c.b16 %v645, %v641
    %v818 = vpack.c.b16 %v646, %v642
    %v819 = vpack.c.b16 %v647, %v643
    %v820 = vpack.c.b16 %v652, %v648
    %v821 = vpack.c.b16 %v653, %v649
    %v822 = vpack.c.b16 %v654, %v650
    %v823 = vpack.c.b16 %v655, %v651
    %v824 = vpack.c.b16 %v660, %v656
    %v825 = vpack.c.b16 %v661, %v657
    %v826 = vpack.c.b16 %v662, %v658
    %v827 = vpack.c.b16 %v663, %v659
    %v828 = vpack.c.b16 %v668, %v664
    %v829 = vpack.c.b16 %v669, %v665
    %v830 = vpack.c.b16 %v670, %v666
    %v831 = vpack.c.b16 %v671, %v667
    %v832 = vpack.c.b16 %v676, %v672
    %v833 = vpack.c.b16 %v677, %v673
    %v834 = vpack.c.b16 %v678, %v674
    %v835 = vpack.c.b16 %v679, %v675
    %v836 = vpack.c.b16 %v684, %v680
    %v837 = vpack.c.b16 %v685, %v681
    %v838 = vpack.c.b16 %v686, %v682
    %v839 = vpack.c.b16 %v687, %v683
    %v840 = vpack.c.b16 %v692, %v688
    %v841 = vpack.c.b16 %v693, %v689
    %v842 = vpack.c.b16 %v694, %v690
    %v843 = vpack.c.b16 %v695, %v691
    %v844 = vpack.c.b16 %v700, %v696
    %v845 = vpack.c.b16 %v701, %v697
    %v846 = vpack.c.b16 %v702, %v698
    %v847 = vpack.c.b16 %v703, %v699
    %v848 = vpack.c.b16 %v708, %v704
    %v849 = vpack.c.b16 %v709, %v705
    %v850 = vpack.c.b16 %v710, %v706
    %v851 = vpack.c.b16 %v711, %v707
    %v852 = vpack.c.b16 %v716, %v712
    %v853 = vpack.c.b16 %v717, %v713
    %v854 = vpack.c.b16 %v718, %v714
    %v855 = vpack.c.b16 %v719, %v715
    %v856 = vpack.c.b16 %v724, %v720
    %v857 = vpack.c.b16 %v725, %v721
    %v858 = vpack.c.b16 %v726, %v722
    %v859 = vpack.c.b16 %v727, %v723
    %v860 = vpack.c.b16 %v732, %v728
    %v861 = vpack.c.b16 %v733, %v729
    %v862 = vpack.c.b16 %v734, %v730
    %v863 = vpack.c.b16 %v735, %v731
    %v993 = vlaneseq
    %v994 = vshrl.u32 %v993, 7
    %v995 = vsub.s32 0, %v994
    %v996 = vrot.slane %v351, %v995
    %v997 = vlaneseq
    %v998 = vshrl.u32 %v997, 7
    %v999 = vsub.s32 1, %v998
    %v1000 = vrot.slane %v351, %v999
    %v1001 = vlaneseq
    %v1002 = vshrl.u32 %v1001, 7
    %v1003 = vsub.s32 2, %v1002
    %v1004 = vrot.slane %v351, %v1003
    %v1005 = vlaneseq
    %v1006 = vshrl.u32 %v1005, 7
    %v1007 = vsub.s32 3, %v1006
    %v1008 = vrot.slane %v351, %v1007
    %1013 = vmatprep.subr.bf16.mxu0 %v737
    %1014 = vmatpush1.bf16.msra.mxu0 %v736
    %1015 = vmatprep.subr.bf16.mxu0 %v741
    %1016 = vmatpush1.bf16.msra.mxu0 %v740
    %1017 = vmatprep.subr.bf16.mxu0 %v745
    %1018 = vmatpush1.bf16.msra.mxu0 %v744
    %1019 = vmatprep.subr.bf16.mxu0 %v749
    %1020 = vmatpush1.bf16.msra.mxu0 %v748
    %1021 = vmatprep.subr.bf16.mxu0 %v753
    %1022 = vmatpush1.bf16.msra.mxu0 %v752
    %1023 = vmatprep.subr.bf16.mxu0 %v757
    %1024 = vmatpush1.bf16.msra.mxu0 %v756
    %1025 = vmatprep.subr.bf16.mxu0 %v761
    %1026 = vmatpush1.bf16.msra.mxu0 %v760
    %1027 = vmatprep.subr.bf16.mxu0 %v765
    %1028 = vmatpush1.bf16.msra.mxu0 %v764
    %1029 = vmatprep.subr.bf16.mxu0 %v769
    %1030 = vmatpush1.bf16.msra.mxu0 %v768
    %1031 = vmatprep.subr.bf16.mxu0 %v773
    %1032 = vmatpush1.bf16.msra.mxu0 %v772
    %1033 = vmatprep.subr.bf16.mxu0 %v777
    %1034 = vmatpush1.bf16.msra.mxu0 %v776
    %1035 = vmatprep.subr.bf16.mxu0 %v781
    %1036 = vmatpush1.bf16.msra.mxu0 %v780
    %1037 = vmatprep.subr.bf16.mxu0 %v785
    %1038 = vmatpush1.bf16.msra.mxu0 %v784
    %1039 = vmatprep.subr.bf16.mxu0 %v789
    %1040 = vmatpush1.bf16.msra.mxu0 %v788
    %1041 = vmatprep.subr.bf16.mxu0 %v793
    %1042 = vmatpush1.bf16.msra.mxu0 %v792
    %1043 = vmatprep.subr.bf16.mxu0 %v797
    %1044 = vmatpush1.bf16.msra.mxu0 %v796
    %1045 = vmatprep.mubr.bf16.mxu0 %v220
    %1046 = vmatmul.mubr.bf16.gmra.mrb[0].mxu0 %v219
    %v1047 = vpop.f32.mrb[0].mxu0
    %v1048 = vadd.f32 %v996, %v1047
    %v1049 = vpop.f32.mrb[0].mxu0
    %v1050 = vadd.f32 %v1000, %v1049
    %v1051 = vpop.f32.mrb[0].mxu0
    %v1052 = vpop.f32.mrb[0].mxu0
    %1053 = vdwg.mxu0
    %1054 = vmatprep.subr.bf16.mxu0 %v801
    %1055 = vmatpush1.bf16.msra.mxu0 %v800
    %1056 = vmatprep.subr.bf16.mxu0 %v805
    %1057 = vmatpush1.bf16.msra.mxu0 %v804
    %1058 = vmatprep.subr.bf16.mxu0 %v809
    %1059 = vmatpush1.bf16.msra.mxu0 %v808
    %1060 = vmatprep.subr.bf16.mxu0 %v813
    %1061 = vmatpush1.bf16.msra.mxu0 %v812
    %1062 = vmatprep.subr.bf16.mxu0 %v817
    %1063 = vmatpush1.bf16.msra.mxu0 %v816
    %1064 = vmatprep.subr.bf16.mxu0 %v821
    %1065 = vmatpush1.bf16.msra.mxu0 %v820
    %1066 = vmatprep.subr.bf16.mxu0 %v825
    %1067 = vmatpush1.bf16.msra.mxu0 %v824
    %1068 = vmatprep.subr.bf16.mxu0 %v829
    %1069 = vmatpush1.bf16.msra.mxu0 %v828
    %1070 = vmatprep.subr.bf16.mxu0 %v833
    %1071 = vmatpush1.bf16.msra.mxu0 %v832
    %1072 = vmatprep.subr.bf16.mxu0 %v837
    %1073 = vmatpush1.bf16.msra.mxu0 %v836
    %1074 = vmatprep.subr.bf16.mxu0 %v841
    %1075 = vmatpush1.bf16.msra.mxu0 %v840
    %1076 = vmatprep.subr.bf16.mxu0 %v845
    %1077 = vmatpush1.bf16.msra.mxu0 %v844
    %1078 = vmatprep.subr.bf16.mxu0 %v849
    %1079 = vmatpush1.bf16.msra.mxu0 %v848
    %1080 = vmatprep.subr.bf16.mxu0 %v853
    %1081 = vmatpush1.bf16.msra.mxu0 %v852
    %1082 = vmatprep.subr.bf16.mxu0 %v857
    %1083 = vmatpush1.bf16.msra.mxu0 %v856
    %1084 = vmatprep.subr.bf16.mxu0 %v861
    %1085 = vmatpush1.bf16.msra.mxu0 %v860
    %1086 = vmatprep.mubr.bf16.mxu0 %v222
    %1087 = vmatmul.mubr.bf16.gmra.mrb[0].mxu0 %v221
    %v1088 = vpop.f32.mrb[0].mxu0
    %v1089 = vadd.f32 %v1048, %v1088
    %v1090 = vpop.f32.mrb[0].mxu0
    %v1091 = vadd.f32 %v1050, %v1090
    %v1092 = vpop.f32.mrb[0].mxu0
    %v1093 = vpop.f32.mrb[0].mxu0
    %1094 = vdwg.mxu0
    %1095 = vmatprep.subr.bf16.mxu0 %v739
    %1096 = vmatpush1.bf16.msra.mxu0 %v738
    %1097 = vmatprep.subr.bf16.mxu0 %v743
    %1098 = vmatpush1.bf16.msra.mxu0 %v742
    %1099 = vmatprep.subr.bf16.mxu0 %v747
    %1100 = vmatpush1.bf16.msra.mxu0 %v746
    %1101 = vmatprep.subr.bf16.mxu0 %v751
    %1102 = vmatpush1.bf16.msra.mxu0 %v750
    %1103 = vmatprep.subr.bf16.mxu0 %v755
    %1104 = vmatpush1.bf16.msra.mxu0 %v754
    %1105 = vmatprep.subr.bf16.mxu0 %v759
    %1106 = vmatpush1.bf16.msra.mxu0 %v758
    %1107 = vmatprep.subr.bf16.mxu0 %v763
    %1108 = vmatpush1.bf16.msra.mxu0 %v762
    %1109 = vmatprep.subr.bf16.mxu0 %v767
    %1110 = vmatpush1.bf16.msra.mxu0 %v766
    %1111 = vmatprep.subr.bf16.mxu0 %v771
    %1112 = vmatpush1.bf16.msra.mxu0 %v770
    %1113 = vmatprep.subr.bf16.mxu0 %v775
    %1114 = vmatpush1.bf16.msra.mxu0 %v774
    %1115 = vmatprep.subr.bf16.mxu0 %v779
    %1116 = vmatpush1.bf16.msra.mxu0 %v778
    %1117 = vmatprep.subr.bf16.mxu0 %v783
    %1118 = vmatpush1.bf16.msra.mxu0 %v782
    %1119 = vmatprep.subr.bf16.mxu0 %v787
    %1120 = vmatpush1.bf16.msra.mxu0 %v786
    %1121 = vmatprep.subr.bf16.mxu0 %v791
    %1122 = vmatpush1.bf16.msra.mxu0 %v790
    %1123 = vmatprep.subr.bf16.mxu0 %v795
    %1124 = vmatpush1.bf16.msra.mxu0 %v794
    %1125 = vmatprep.subr.bf16.mxu0 %v799
    %1126 = vmatpush1.bf16.msra.mxu0 %v798
    %1127 = vmatprep.mubr.bf16.mxu0 %v220
    %1128 = vmatmul.mubr.bf16.gmra.mrb[0].mxu0 %v219
    %v1129 = vpop.f32.mrb[0].mxu0
    %v1130 = vadd.f32 %v1004, %v1129
    %v1131 = vpop.f32.mrb[0].mxu0
    %v1132 = vadd.f32 %v1008, %v1131
    %v1133 = vpop.f32.mrb[0].mxu0
    %v1134 = vpop.f32.mrb[0].mxu0
    %1135 = vdwg.mxu0
    %1136 = vmatprep.subr.bf16.mxu0 %v803
    %1137 = vmatpush1.bf16.msra.mxu0 %v802
    %1138 = vmatprep.subr.bf16.mxu0 %v807
    %1139 = vmatpush1.bf16.msra.mxu0 %v806
    %1140 = vmatprep.subr.bf16.mxu0 %v811
    %1141 = vmatpush1.bf16.msra.mxu0 %v810
    %1142 = vmatprep.subr.bf16.mxu0 %v815
    %1143 = vmatpush1.bf16.msra.mxu0 %v814
    %1144 = vmatprep.subr.bf16.mxu0 %v819
    %1145 = vmatpush1.bf16.msra.mxu0 %v818
    %1146 = vmatprep.subr.bf16.mxu0 %v823
    %1147 = vmatpush1.bf16.msra.mxu0 %v822
    %1148 = vmatprep.subr.bf16.mxu0 %v827
    %1149 = vmatpush1.bf16.msra.mxu0 %v826
    %1150 = vmatprep.subr.bf16.mxu0 %v831
    %1151 = vmatpush1.bf16.msra.mxu0 %v830
    %1152 = vmatprep.subr.bf16.mxu0 %v835
    %1153 = vmatpush1.bf16.msra.mxu0 %v834
    %1154 = vmatprep.subr.bf16.mxu0 %v839
    %1155 = vmatpush1.bf16.msra.mxu0 %v838
    %1156 = vmatprep.subr.bf16.mxu0 %v843
    %1157 = vmatpush1.bf16.msra.mxu0 %v842
    %1158 = vmatprep.subr.bf16.mxu0 %v847
    %1159 = vmatpush1.bf16.msra.mxu0 %v846
    %1160 = vmatprep.subr.bf16.mxu0 %v851
    %1161 = vmatpush1.bf16.msra.mxu0 %v850
    %1162 = vmatprep.subr.bf16.mxu0 %v855
    %1163 = vmatpush1.bf16.msra.mxu0 %v854
    %1164 = vmatprep.subr.bf16.mxu0 %v859
    %1165 = vmatpush1.bf16.msra.mxu0 %v858
    %1166 = vmatprep.subr.bf16.mxu0 %v863
    %1167 = vmatpush1.bf16.msra.mxu0 %v862
    %1168 = vmatprep.mubr.bf16.mxu0 %v222
    %1169 = vmatmul.mubr.bf16.gmra.mrb[0].mxu0 %v221
    %v1170 = vpop.f32.mrb[0].mxu0
    %v1171 = vadd.f32 %v1130, %v1170
    %v1172 = vpop.f32.mrb[0].mxu0
    %v1173 = vadd.f32 %v1132, %v1172
    %v1174 = vpop.f32.mrb[0].mxu0
    %v1175 = vpop.f32.mrb[0].mxu0
    %1176 = vdwg.mxu0
    %v1177 = vmax.f32 %v1089, 0.0
    %v1178 = vmax.f32 %v1091, 0.0
    %v1179 = vmax.f32 %v1171, 0.0
    %v1180 = vmax.f32 %v1173, 0.0
    %v1181 = vpack.c.bf16 %v1177, %v1177
    %v1182 = vpack.c.bf16 %v1178, %v1178
    %v1183 = vpack.c.bf16 %v1179, %v1179
    %v1184 = vpack.c.bf16 %v1180, %v1180
    %v1185 = vld [vmem:[#allocation8] sm:$0xf]
    %v1186 = vld [vmem:[#allocation8 + $0x4] sm:$0xf]
    %v1187 = vld [vmem:[#allocation8 + $0x8] sm:$0xf]
    %v1188 = vld [vmem:[#allocation8 + $0xc] sm:$0xf]
    %v1189 = vld [vmem:[#allocation8 + $0x10] sm:$0xf]
    %v1190 = vld [vmem:[#allocation8 + $0x14] sm:$0xf]
    %v1191 = vld [vmem:[#allocation8 + $0x18] sm:$0xf]
    %v1192 = vld [vmem:[#allocation8 + $0x1c] sm:$0xf]
    %v1193 = vld [vmem:[#allocation8 + $0x20] sm:$0xf]
    %v1194 = vld [vmem:[#allocation8 + $0x24] sm:$0xf]
    %v1195 = vld [vmem:[#allocation8 + $0x28] sm:$0xf]
    %v1196 = vld [vmem:[#allocation8 + $0x2c] sm:$0xf]
    %v1197 = vld [vmem:[#allocation8 + $0x30] sm:$0xf]
    %v1198 = vld [vmem:[#allocation8 + $0x34] sm:$0xf]
    %v1199 = vld [vmem:[#allocation8 + $0x38] sm:$0xf]
    %v1200 = vld [vmem:[#allocation8 + $0x3c] sm:$0xf]
    %v1201 = vld [vmem:[#allocation8 + $0x40] sm:$0xf]
    %v1202 = vld [vmem:[#allocation8 + $0x44] sm:$0xf]
    %v1203 = vld [vmem:[#allocation8 + $0x48] sm:$0xf]
    %v1204 = vld [vmem:[#allocation8 + $0x4c] sm:$0xf]
    %v1205 = vld [vmem:[#allocation8 + $0x50] sm:$0xf]
    %v1206 = vld [vmem:[#allocation8 + $0x54] sm:$0xf]
    %v1207 = vld [vmem:[#allocation8 + $0x58] sm:$0xf]
    %v1208 = vld [vmem:[#allocation8 + $0x5c] sm:$0xf]
    %v1209 = vld [vmem:[#allocation8 + $0x60] sm:$0xf]
    %v1210 = vld [vmem:[#allocation8 + $0x64] sm:$0xf]
    %v1211 = vld [vmem:[#allocation8 + $0x68] sm:$0xf]
    %v1212 = vld [vmem:[#allocation8 + $0x6c] sm:$0xf]
    %v1213 = vld [vmem:[#allocation8 + $0x70] sm:$0xf]
    %v1214 = vld [vmem:[#allocation8 + $0x74] sm:$0xf]
    %v1215 = vld [vmem:[#allocation8 + $0x78] sm:$0xf]
    %v1216 = vld [vmem:[#allocation8 + $0x7c] sm:$0xf]
    %v1217 = vld [vmem:[#allocation8 + $0x80] sm:$0xf]
    %v1218 = vld [vmem:[#allocation8 + $0x84] sm:$0xf]
    %v1219 = vld [vmem:[#allocation8 + $0x88] sm:$0xf]
    %v1220 = vld [vmem:[#allocation8 + $0x8c] sm:$0xf]
    %v1221 = vld [vmem:[#allocation8 + $0x90] sm:$0xf]
    %v1222 = vld [vmem:[#allocation8 + $0x94] sm:$0xf]
    %v1223 = vld [vmem:[#allocation8 + $0x98] sm:$0xf]
    %v1224 = vld [vmem:[#allocation8 + $0x9c] sm:$0xf]
    %v1225 = vld [vmem:[#allocation8 + $0xa0] sm:$0xf]
    %v1226 = vld [vmem:[#allocation8 + $0xa4] sm:$0xf]
    %v1227 = vld [vmem:[#allocation8 + $0xa8] sm:$0xf]
    %v1228 = vld [vmem:[#allocation8 + $0xac] sm:$0xf]
    %v1229 = vld [vmem:[#allocation8 + $0xb0] sm:$0xf]
    %v1230 = vld [vmem:[#allocation8 + $0xb4] sm:$0xf]
    %v1231 = vld [vmem:[#allocation8 + $0xb8] sm:$0xf]
    %v1232 = vld [vmem:[#allocation8 + $0xbc] sm:$0xf]
    %v1233 = vld [vmem:[#allocation8 + $0xc0] sm:$0xf]
    %v1234 = vld [vmem:[#allocation8 + $0xc4] sm:$0xf]
    %v1235 = vld [vmem:[#allocation8 + $0xc8] sm:$0xf]
    %v1236 = vld [vmem:[#allocation8 + $0xcc] sm:$0xf]
    %v1237 = vld [vmem:[#allocation8 + $0xd0] sm:$0xf]
    %v1238 = vld [vmem:[#allocation8 + $0xd4] sm:$0xf]
    %v1239 = vld [vmem:[#allocation8 + $0xd8] sm:$0xf]
    %v1240 = vld [vmem:[#allocation8 + $0xdc] sm:$0xf]
    %v1241 = vld [vmem:[#allocation8 + $0xe0] sm:$0xf]
    %v1242 = vld [vmem:[#allocation8 + $0xe4] sm:$0xf]
    %v1243 = vld [vmem:[#allocation8 + $0xe8] sm:$0xf]
    %v1244 = vld [vmem:[#allocation8 + $0xec] sm:$0xf]
    %v1245 = vld [vmem:[#allocation8 + $0xf0] sm:$0xf]
    %v1246 = vld [vmem:[#allocation8 + $0xf4] sm:$0xf]
    %v1247 = vld [vmem:[#allocation8 + $0xf8] sm:$0xf]
    %v1248 = vld [vmem:[#allocation8 + $0xfc] sm:$0xf]
    %v1249 = vld [vmem:[%s6] sm:$0x1]
    %v1314 = vunpack.c.l.b16 %v1185
    %v1315 = vunpack.c.l.b16 %v1186
    %v1316 = vunpack.c.l.b16 %v1187
    %v1317 = vunpack.c.l.b16 %v1188
    %v1318 = vunpack.c.l.b16 %v1189
    %v1319 = vunpack.c.l.b16 %v1190
    %v1320 = vunpack.c.l.b16 %v1191
    %v1321 = vunpack.c.l.b16 %v1192
    %v1322 = vunpack.c.l.b16 %v1193
    %v1323 = vunpack.c.l.b16 %v1194
    %v1324 = vunpack.c.l.b16 %v1195
    %v1325 = vunpack.c.l.b16 %v1196
    %v1326 = vunpack.c.l.b16 %v1197
    %v1327 = vunpack.c.l.b16 %v1198
    %v1328 = vunpack.c.l.b16 %v1199
    %v1329 = vunpack.c.l.b16 %v1200
    %v1330 = vunpack.c.l.b16 %v1201
    %v1331 = vunpack.c.l.b16 %v1202
    %v1332 = vunpack.c.l.b16 %v1203
    %v1333 = vunpack.c.l.b16 %v1204
    %v1334 = vunpack.c.l.b16 %v1205
    %v1335 = vunpack.c.l.b16 %v1206
    %v1336 = vunpack.c.l.b16 %v1207
    %v1337 = vunpack.c.l.b16 %v1208
    %v1338 = vunpack.c.l.b16 %v1209
    %v1339 = vunpack.c.l.b16 %v1210
    %v1340 = vunpack.c.l.b16 %v1211
    %v1341 = vunpack.c.l.b16 %v1212
    %v1342 = vunpack.c.l.b16 %v1213
    %v1343 = vunpack.c.l.b16 %v1214
    %v1344 = vunpack.c.l.b16 %v1215
    %v1345 = vunpack.c.l.b16 %v1216
    %v1346 = vunpack.c.l.b16 %v1217
    %v1347 = vunpack.c.l.b16 %v1218
    %v1348 = vunpack.c.l.b16 %v1219
    %v1349 = vunpack.c.l.b16 %v1220
    %v1350 = vunpack.c.l.b16 %v1221
    %v1351 = vunpack.c.l.b16 %v1222
    %v1352 = vunpack.c.l.b16 %v1223
    %v1353 = vunpack.c.l.b16 %v1224
    %v1354 = vunpack.c.l.b16 %v1225
    %v1355 = vunpack.c.l.b16 %v1226
    %v1356 = vunpack.c.l.b16 %v1227
    %v1357 = vunpack.c.l.b16 %v1228
    %v1358 = vunpack.c.l.b16 %v1229
    %v1359 = vunpack.c.l.b16 %v1230
    %v1360 = vunpack.c.l.b16 %v1231
    %v1361 = vunpack.c.l.b16 %v1232
    %v1362 = vunpack.c.l.b16 %v1233
    %v1363 = vunpack.c.l.b16 %v1234
    %v1364 = vunpack.c.l.b16 %v1235
    %v1365 = vunpack.c.l.b16 %v1236
    %v1366 = vunpack.c.l.b16 %v1237
    %v1367 = vunpack.c.l.b16 %v1238
    %v1368 = vunpack.c.l.b16 %v1239
    %v1369 = vunpack.c.l.b16 %v1240
    %v1370 = vunpack.c.l.b16 %v1241
    %v1371 = vunpack.c.l.b16 %v1242
    %v1372 = vunpack.c.l.b16 %v1243
    %v1373 = vunpack.c.l.b16 %v1244
    %v1374 = vunpack.c.l.b16 %v1245
    %v1375 = vunpack.c.l.b16 %v1246
    %v1376 = vunpack.c.l.b16 %v1247
    %v1377 = vunpack.c.l.b16 %v1248
    %v1378 = vpack.c.b16 %v1315, %v1314
    %v1379 = vpack.c.b16 %v1317, %v1316
    %v1380 = vpack.c.b16 %v1319, %v1318
    %v1381 = vpack.c.b16 %v1321, %v1320
    %v1382 = vpack.c.b16 %v1323, %v1322
    %v1383 = vpack.c.b16 %v1325, %v1324
    %v1384 = vpack.c.b16 %v1327, %v1326
    %v1385 = vpack.c.b16 %v1329, %v1328
    %v1386 = vpack.c.b16 %v1331, %v1330
    %v1387 = vpack.c.b16 %v1333, %v1332
    %v1388 = vpack.c.b16 %v1335, %v1334
    %v1389 = vpack.c.b16 %v1337, %v1336
    %v1390 = vpack.c.b16 %v1339, %v1338
    %v1391 = vpack.c.b16 %v1341, %v1340
    %v1392 = vpack.c.b16 %v1343, %v1342
    %v1393 = vpack.c.b16 %v1345, %v1344
    %v1394 = vpack.c.b16 %v1347, %v1346
    %v1395 = vpack.c.b16 %v1349, %v1348
    %v1396 = vpack.c.b16 %v1351, %v1350
    %v1397 = vpack.c.b16 %v1353, %v1352
    %v1398 = vpack.c.b16 %v1355, %v1354
    %v1399 = vpack.c.b16 %v1357, %v1356
    %v1400 = vpack.c.b16 %v1359, %v1358
    %v1401 = vpack.c.b16 %v1361, %v1360
    %v1402 = vpack.c.b16 %v1363, %v1362
    %v1403 = vpack.c.b16 %v1365, %v1364
    %v1404 = vpack.c.b16 %v1367, %v1366
    %v1405 = vpack.c.b16 %v1369, %v1368
    %v1406 = vpack.c.b16 %v1371, %v1370
    %v1407 = vpack.c.b16 %v1373, %v1372
    %v1408 = vpack.c.b16 %v1375, %v1374
    %v1409 = vpack.c.b16 %v1377, %v1376
    %1442 = vmatprep.subr.bf16.mxu0 0
    %1443 = vmatpush1.bf16.msra.mxu0 %v1378
    %1444 = vmatprep.subr.bf16.mxu0 0
    %1445 = vmatpush1.bf16.msra.mxu0 %v1379
    %1446 = vmatprep.subr.bf16.mxu0 0
    %1447 = vmatpush1.bf16.msra.mxu0 %v1380
    %1448 = vmatprep.subr.bf16.mxu0 0
    %1449 = vmatpush1.bf16.msra.mxu0 %v1381
    %1450 = vmatprep.subr.bf16.mxu0 0
    %1451 = vmatpush1.bf16.msra.mxu0 %v1382
    %1452 = vmatprep.subr.bf16.mxu0 0
    %1453 = vmatpush1.bf16.msra.mxu0 %v1383
    %1454 = vmatprep.subr.bf16.mxu0 0
    %1455 = vmatpush1.bf16.msra.mxu0 %v1384
    %1456 = vmatprep.subr.bf16.mxu0 0
    %1457 = vmatpush1.bf16.msra.mxu0 %v1385
    %1458 = vmatprep.subr.bf16.mxu0 0
    %1459 = vmatpush1.bf16.msra.mxu0 %v1386
    %1460 = vmatprep.subr.bf16.mxu0 0
    %1461 = vmatpush1.bf16.msra.mxu0 %v1387
    %1462 = vmatprep.subr.bf16.mxu0 0
    %1463 = vmatpush1.bf16.msra.mxu0 %v1388
    %1464 = vmatprep.subr.bf16.mxu0 0
    %1465 = vmatpush1.bf16.msra.mxu0 %v1389
    %1466 = vmatprep.subr.bf16.mxu0 0
    %1467 = vmatpush1.bf16.msra.mxu0 %v1390
    %1468 = vmatprep.subr.bf16.mxu0 0
    %1469 = vmatpush1.bf16.msra.mxu0 %v1391
    %1470 = vmatprep.subr.bf16.mxu0 0
    %1471 = vmatpush1.bf16.msra.mxu0 %v1392
    %1472 = vmatprep.subr.bf16.mxu0 0
    %1473 = vmatpush1.bf16.msra.mxu0 %v1393
    %1474 = vmatprep.mubr.bf16.mxu0 %v1182
    %1475 = vmatmul.mubr.bf16.gmra.mrb[0].mxu0 %v1181
    %v1476 = vpop.f32.mrb[0].mxu0
    %v1477 = vadd.f32 %v1249, %v1476
    %v1478 = vpop.f32.mrb[0].mxu0
    %v1479 = vpop.f32.mrb[0].mxu0
    %v1480 = vpop.f32.mrb[0].mxu0
    %1481 = vdwg.mxu0
    %1482 = vmatprep.subr.bf16.mxu0 0
    %1483 = vmatpush1.bf16.msra.mxu0 %v1394
    %1484 = vmatprep.subr.bf16.mxu0 0
    %1485 = vmatpush1.bf16.msra.mxu0 %v1395
    %1486 = vmatprep.subr.bf16.mxu0 0
    %1487 = vmatpush1.bf16.msra.mxu0 %v1396
    %1488 = vmatprep.subr.bf16.mxu0 0
    %1489 = vmatpush1.bf16.msra.mxu0 %v1397
    %1490 = vmatprep.subr.bf16.mxu0 0
    %1491 = vmatpush1.bf16.msra.mxu0 %v1398
    %1492 = vmatprep.subr.bf16.mxu0 0
    %1493 = vmatpush1.bf16.msra.mxu0 %v1399
    %1494 = vmatprep.subr.bf16.mxu0 0
    %1495 = vmatpush1.bf16.msra.mxu0 %v1400
    %1496 = vmatprep.subr.bf16.mxu0 0
    %1497 = vmatpush1.bf16.msra.mxu0 %v1401
    %1498 = vmatprep.subr.bf16.mxu0 0
    %1499 = vmatpush1.bf16.msra.mxu0 %v1402
    %1500 = vmatprep.subr.bf16.mxu0 0
    %1501 = vmatpush1.bf16.msra.mxu0 %v1403
    %1502 = vmatprep.subr.bf16.mxu0 0
    %1503 = vmatpush1.bf16.msra.mxu0 %v1404
    %1504 = vmatprep.subr.bf16.mxu0 0
    %1505 = vmatpush1.bf16.msra.mxu0 %v1405
    %1506 = vmatprep.subr.bf16.mxu0 0
    %1507 = vmatpush1.bf16.msra.mxu0 %v1406
    %1508 = vmatprep.subr.bf16.mxu0 0
    %1509 = vmatpush1.bf16.msra.mxu0 %v1407
    %1510 = vmatprep.subr.bf16.mxu0 0
    %1511 = vmatpush1.bf16.msra.mxu0 %v1408
    %1512 = vmatprep.subr.bf16.mxu0 0
    %1513 = vmatpush1.bf16.msra.mxu0 %v1409
    %1514 = vmatprep.mubr.bf16.mxu0 %v1184
    %1515 = vmatmul.mubr.bf16.gmra.mrb[0].mxu0 %v1183
    %v1516 = vpop.f32.mrb[0].mxu0
    %v1517 = vadd.f32 %v1477, %v1516
    %v1518 = vpop.f32.mrb[0].mxu0
    %v1519 = vpop.f32.mrb[0].mxu0
    %v1520 = vpop.f32.mrb[0].mxu0
    %1521 = vdwg.mxu0
    %1522 = vst [vmem:[#allocation10] sm:$0x1] %v1517
    // Predicated region
    $region46: #{tpu_custom_call.1} parent=1 // pred_check
      _
    $region47: #{tpu_custom_call.1} parent=1 // pred_check_branch
      %1524 = sbr.rel (0) target = $region49
    $region48: #{tpu_custom_call.1} parent=1 // pred_region
      %s1526 = ssub.s32 16, 16
      %1527 = vsyncadd [#allocation4], %s1526
      %s1529 = sshll.u32 [#allocation10], 4
      %s1530 = int_to_ptr.vmem [resolvable:$true] %s1529
      %1532 = dma.vmem_to_hbm [thread:$0]  %s1530, 16, %s7, [#allocation4]
    $region49: #{tpu_custom_call.1} parent=1 // pred_fallthru
      _
    // Predicated region
    $region50: #{tpu_custom_call.1} parent=1 // pred_check
      _
    $region51: #{tpu_custom_call.1} parent=1 // pred_check_branch
      %1534 = sbr.rel (0) target = $region53
    $region52: #{tpu_custom_call.1} parent=1 // pred_region
      %1535 = dma.done [#allocation4], 16
    $region53: #{tpu_custom_call.1} parent=1 // pred_fallthru
      _
    %1536 = vsyncpa [#allocation3], 1
    %1537 = vsyncpa [#allocation6], 1
    %1538 = vsyncpa [#allocation9], 1
    %1539 = vsyncpa [#allocation4], 1

</llo_original>
